<compile_context>
chip_gen: v7x
topology: tpu7x:2x2x1
jax: 0.10.0
libtpu: 0.0.40
codegen_flags: <defaults>
</compile_context>

<pallas_src>
import math

import jax
import jax.numpy as jnp
from jax.experimental import pallas as pl
from jax.experimental.pallas import tpu as pltpu


# ------------------------------- helpers -------------------------------------

def _round_up(n: int, m: int) -> int:
    return ((n + m - 1) // m) * m


def _get_act(nonlin: str):
    nonlin = nonlin.lower()
    if nonlin == "tanh":
        return jnp.tanh
    if nonlin == "relu":
        return lambda v: jnp.maximum(v, 0.0)
    if nonlin == "sigmoid":
        return jax.nn.sigmoid
    raise ValueError(f"unknown nonlin {nonlin}")


def _pad_params(weights, biases):
    """Zero-pad every layer dim up to a multiple of 128 (lane-dense MXU tiles)."""
    dims = [weights[0].shape[0]] + [w.shape[1] for w in weights]
    dims_p = [_round_up(d, 128) for d in dims]
    wp, bp = [], []
    for l, (w, b) in enumerate(zip(weights, biases)):
        W = jnp.zeros((dims_p[l], dims_p[l + 1]), w.dtype)
        W = W.at[: dims[l], : dims[l + 1]].set(w)
        b2 = jnp.asarray(b).reshape(1, -1)
        Bv = jnp.zeros((1, dims_p[l + 1]), b2.dtype)
        Bv = Bv.at[:, : dims[l + 1]].set(b2)
        wp.append(W)
        bp.append(Bv)
    return wp, bp, dims, dims_p


def _param_bytes(arrays):
    return int(sum(int(a.size) * a.dtype.itemsize for a in arrays))


def _choose_tm(R, din_p, dout_p, param_bytes, *, budget_bytes=40 << 20, tm_max=512):
    """Largest row tile (<= tm_max) whose double-buffered I/O + params fit the budget."""
    tm = tm_max
    while tm > 8 and (2 * tm * (din_p + dout_p) * 4 + 2 * param_bytes) > budget_bytes:
        tm //= 2
    # Don't make the tile bigger than the (8-aligned) row count itself.
    tm = max(8, min(tm, _round_up(R, 8)))
    return tm


def _compiler_params(needed_bytes, semantics):
    # Explicit scoped-VMEM sizing: generous slack over our estimate, but capped so the
    # same kernel stays portable to v7x (64 MiB physical VMEM per TensorCore).
    limit = int(min(max(2 * needed_bytes + (8 << 20), 16 << 20), 48 << 20))
    return pltpu.CompilerParams(
        dimension_semantics=semantics, vmem_limit_bytes=limit
    )


# ----------------------------- MLP kernel ------------------------------------

def _make_mlp_kernel(n_layers: int, nonlin: str):
    act = _get_act(nonlin)

    def kernel(x_ref, *refs):
        # refs = (w1, b1, ..., wL, bL, out)
        out_ref = refs[2 * n_layers]
        h = x_ref[...].astype(jnp.float32)                 # (tm, D0_p)
        for l in range(n_layers):
            w = refs[2 * l][...].astype(jnp.float32)       # (Dl_p, Dl1_p)
            b = refs[2 * l + 1][...].astype(jnp.float32)   # (1, Dl1_p)
            h = act(jnp.dot(h, w, preferred_element_type=jnp.float32) + b)
        out_ref[...] = h.astype(out_ref.dtype)

    return kernel


def mlp_forward(x_rows, weights, biases, nonlin, *, tm_max=512):
    """x_rows: (R, D_in). Returns (R, D_last). Handles arbitrary R via row padding."""
    R, D_in = x_rows.shape
    wp, bp, dims, dims_p = _pad_params(weights, biases)
    n_layers = len(wp)
    Din_p, Dlast_p = dims_p[0], dims_p[-1]
    D_last = dims[-1]

    pbytes = _param_bytes(wp + bp)
    tm = _choose_tm(R, Din_p, Dlast_p, pbytes, tm_max=tm_max)
    Rp = _round_up(R, tm)

    xp = jnp.zeros((Rp, Din_p), x_rows.dtype).at[:R, :D_in].set(x_rows)

    in_specs = [pl.BlockSpec((tm, Din_p), lambda i: (i, 0))]
    params = []
    for w, b in zip(wp, bp):
        # Constant index_map -> weights DMA'd once and stay resident (note: each still
        # reserves 2x its size for pipelining; padded 128-wide layers keep this small).
        in_specs.append(pl.BlockSpec(w.shape, lambda i: (0, 0)))
        in_specs.append(pl.BlockSpec(b.shape, lambda i: (0, 0)))
        params.extend([w, b])
    out_spec = pl.BlockSpec((tm, Dlast_p), lambda i: (i, 0))

    needed = 2 * tm * (Din_p + Dlast_p) * 4 + 2 * pbytes

    out = pl.pallas_call(
        _make_mlp_kernel(n_layers, nonlin),
        out_shape=jax.ShapeDtypeStruct((Rp, Dlast_p), x_rows.dtype),
        grid_spec=pltpu.PrefetchScalarGridSpec(
            num_scalar_prefetch=0,
            grid=(Rp // tm,),
            in_specs=in_specs,
            out_specs=out_spec,
        ),
        compiler_params=_compiler_params(needed, ("parallel",)),
    )(xp, *params)
    return out[:R, :D_last]


# -------------------- fused MLP + masked average pooling ---------------------

def _make_pooled_kernel(n_layers: int, nonlin: str):
    act = _get_act(nonlin)

    def kernel(x_ref, mask_ref, *refs):
        # refs = (w1, b1, ..., wL, bL, o_ref, acc_scratch, len_scratch)
        o_ref = refs[2 * n_layers]
        acc_ref = refs[2 * n_layers + 1]
        len_ref = refs[2 * n_layers + 2]
        s = pl.program_id(0)

        @pl.when(s == 0)
        def _():
            acc_ref[...] = jnp.zeros_like(acc_ref)
            len_ref[...] = jnp.zeros_like(len_ref)

        x = x_ref[...].astype(jnp.float32)                 # (B, ts, Din_p)
        b_tile, ts, d_p = x.shape
        h = x.reshape(b_tile * ts, d_p)
        for l in range(n_layers):
            w = refs[2 * l][...].astype(jnp.float32)
            bias = refs[2 * l + 1][...].astype(jnp.float32)
            h = act(jnp.dot(h, w, preferred_element_type=jnp.float32) + bias)
        h = h.reshape(b_tile, ts, h.shape[-1])             # (B, ts, H_p)

        m = mask_ref[...].astype(jnp.float32)              # (B, ts)
        acc_ref[...] += jnp.sum(h * m[:, :, None], axis=1)          # (B, H_p)
        len_ref[...] += jnp.sum(m, axis=1, keepdims=True)            # (B, 1)

        @pl.when(s == pl.num_programs(0) - 1)
        def _():
            eff = jnp.maximum(len_ref[...], 1.0)           # guard fully-masked rows
            inv = pl.reciprocal(eff, approx=True)          # EUP slot, effectively free
            o_ref[...] = (acc_ref[...] * inv).astype(o_ref.dtype)

    return kernel


def mlp_pool_forward(x, mask, weights, biases, nonlin):
    """x: (B, S, D_in), mask: (B, S). Returns (B, D_last) with masked average pooling
    fused into the MLP epilogue (no HBM round-trip of the (B, S, H) activations)."""
    B, S, D_in = x.shape
    wp, bp, dims, dims_p = _pad_params(weights, biases)
    n_layers = len(wp)
    Din_p, Hp = dims_p[0], dims_p[-1]
    D_last = dims[-1]

    # Sequence tile: whole (8-aligned) sequence for small S, else 512-wide chunks so
    # the mask block stays (8,128)-legal. Padded positions get mask=0 (no contribution).
    if S <= 1024:
        ts = _round_up(S, 8)
        Sp = ts
    else:
        ts = 512
        Sp = _round_up(S, ts)

    xp = jnp.zeros((B, Sp, Din_p), x.dtype).at[:, :S, :D_in].set(x)
    mp = jnp.zeros((B, Sp), mask.dtype).at[:, :S].set(mask)

    in_specs = [
        pl.BlockSpec((B, ts, Din_p), lambda s: (0, s, 0)),
        pl.BlockSpec((B, ts), lambda s: (0, s)),
    ]
    params = []
    for w, b in zip(wp, bp):
        in_specs.append(pl.BlockSpec(w.shape, lambda s: (0, 0)))
        in_specs.append(pl.BlockSpec(b.shape, lambda s: (0, 0)))
        params.extend([w, b])
    out_spec = pl.BlockSpec((B, Hp), lambda s: (0, 0))  # resident accumulator output

    pbytes = _param_bytes(wp + bp)
    needed = (2 * B * ts * (Din_p + 1) * 4) + 2 * B * Hp * 4 + 2 * pbytes + (B * Hp + B) * 4

    out = pl.pallas_call(
        _make_pooled_kernel(n_layers, nonlin),
        out_shape=jax.ShapeDtypeStruct((B, Hp), x.dtype),
        grid_spec=pltpu.PrefetchScalarGridSpec(
            num_scalar_prefetch=0,
            grid=(Sp // ts,),
            in_specs=in_specs,
            out_specs=out_spec,
            scratch_shapes=[
                pltpu.VMEM((B, Hp), jnp.float32),   # masked-sum accumulator
                pltpu.VMEM((B, 1), jnp.float32),    # effective-length accumulator
            ],
        ),
        compiler_params=_compiler_params(needed, ("arbitrary",)),
    )(xp, mp, *params)
    return out[:, :D_last]


# ------------------------------ module wrapper --------------------------------

def init_linear_layer_params(key, input_dim, layer_dims, dtype=jnp.float32):
    """Deterministic init mimicking nn.Linear defaults: U(-1/sqrt(fan_in), 1/sqrt(fan_in))."""
    if isinstance(layer_dims, int):
        layer_dims = [layer_dims]
    dims = [input_dim] + list(layer_dims)
    weights, biases = [], []
    for l in range(len(dims) - 1):
        key, kw, kb = jax.random.split(key, 3)
        bound = 1.0 / math.sqrt(dims[l])
        w = jax.random.uniform(kw, (dims[l], dims[l + 1]), dtype, -bound, bound)
        b = jax.random.uniform(kb, (1, dims[l + 1]), dtype, -bound, bound)
        weights.append(w)
        biases.append(b)
    return weights, biases


def linear_layer_forward(x, weights, biases, nonlin="tanh", avg_pool=False, mask=None):
    """Forward pass matching LinearLayer.forward. x: (..., D_in) (3-D if avg_pool)."""
    if avg_pool:
        assert x.ndim == 3, "avg_pool=True expects (B, S, D_in)"
        B, S, _ = x.shape
        if mask is None:
            mask = jnp.ones((B, S), dtype=x.dtype)
        return mlp_pool_forward(x, mask.astype(x.dtype), weights, biases, nonlin)

    orig_shape = x.shape
    D_in = orig_shape[-1]
    x_rows = x.reshape(-1, D_in)
    h_rows = mlp_forward(x_rows, weights, biases, nonlin)
    D_last = weights[-1].shape[1]
    return h_rows.reshape(orig_shape[:-1] + (D_last,))


# ------------------------------------ main ------------------------------------

if __name__ == "__main__":
    key = jax.random.PRNGKey(0)

    B, S, D_in = 2, 8, 32
    layer_dims = [64, 32]
    nonlin = "tanh"

    k_param, k_x = jax.random.split(key)
    weights, biases = init_linear_layer_params(k_param, D_in, layer_dims)

    x = jax.random.normal(k_x, (B, S, D_in), dtype=jnp.float32)
    # variable-length mask (lengths 8 and 5)
    lengths = jnp.array([8, 5], dtype=jnp.float32)
    mask = (jnp.arange(S)[None, :] < lengths[:, None]).astype(jnp.float32)

    # Pallas forward: avg_pool=True with mask (fused MLP + pool kernel)
    out_pooled = linear_layer_forward(x, weights, biases, nonlin, avg_pool=True, mask=mask)
    out_pooled = jax.block_until_ready(out_pooled)

    # Pallas forward: avg_pool=False (row-tiled MLP kernel)
    out_seq = linear_layer_forward(x, weights, biases, nonlin, avg_pool=False)
    out_seq = jax.block_until_ready(out_seq)

    # pure-JAX reference check
    def ref_forward(x, avg_pool, mask):
        h = x
        for w, b in zip(weights, biases):
            h = jnp.tanh(h @ w + b)
        if avg_pool:
            if mask is None:
                eff = jnp.full((x.shape[0], 1), x.shape[1], dtype=h.dtype)
                return h.sum(axis=1) / eff
            eff = mask.sum(axis=1, keepdims=True)
            return (h * mask[:, :, None]).sum(axis=1) / eff
        return h

    ref_pooled = ref_forward(x, True, mask)
    ref_seq = ref_forward(x, False, None)

    assert out_pooled.shape == (B, layer_dims[-1])
    assert out_seq.shape == (B, S, layer_dims[-1])
    assert jnp.allclose(out_seq, ref_seq, atol=1e-5, rtol=1e-5)
    # pooled path uses the approximate EUP reciprocal -> slightly looser tolerance
    assert jnp.allclose(out_pooled, ref_pooled, atol=2e-3, rtol=2e-3)

    print("KERNEL_OK")
</pallas_src>

<mosaic_0001>
module attributes {stable_mosaic.version = 11 : i64} {
  func.func @kernel(%arg0: i32, %arg1: memref<2x8x128xf32, #tpu.memory_space<vmem>>, %arg2: memref<2x8xf32, #tpu.memory_space<vmem>>, %arg3: memref<128x128xf32, #tpu.memory_space<vmem>>, %arg4: memref<1x128xf32, #tpu.memory_space<vmem>>, %arg5: memref<128x128xf32, #tpu.memory_space<vmem>>, %arg6: memref<1x128xf32, #tpu.memory_space<vmem>>, %arg7: memref<2x128xf32, #tpu.memory_space<vmem>>, %arg8: memref<2x128xf32, #tpu.memory_space<vmem>>, %arg9: memref<2x1xf32, #tpu.memory_space<vmem>>) attributes {dimension_semantics = [#tpu.dimension_semantics<arbitrary>], iteration_bounds = array<i64: 1>, scalar_prefetch = 0 : i64, scratch_operands = 2 : i64, tpu.core_type = #tpu.core_type<tc>, window_params = [{transform_indices = @transform_0, window_bounds = array<i64: 2, 8, 128>}, {transform_indices = @transform_1, window_bounds = array<i64: 2, 8>}, {pipeline_mode = #tpu.pipeline_mode<synchronous>, transform_indices = @transform_2, window_bounds = array<i64: 128, 128>}, {pipeline_mode = #tpu.pipeline_mode<synchronous>, transform_indices = @transform_3, window_bounds = array<i64: 1, 128>}, {pipeline_mode = #tpu.pipeline_mode<synchronous>, transform_indices = @transform_4, window_bounds = array<i64: 128, 128>}, {pipeline_mode = #tpu.pipeline_mode<synchronous>, transform_indices = @transform_5, window_bounds = array<i64: 1, 128>}, {pipeline_mode = #tpu.pipeline_mode<synchronous>, transform_indices = @transform_6, window_bounds = array<i64: 2, 128>}]} {
    %c0_i32 = arith.constant 0 : i32
    %0 = arith.cmpi eq, %arg0, %c0_i32 : i32
    %1 = arith.extui %0 : i1 to i32
    %c0_i32_0 = arith.constant 0 : i32
    %2 = arith.cmpi ne, %1, %c0_i32_0 : i32
    scf.if %2 {
      %cst_26 = arith.constant 0.000000e+00 : f32
      %34 = vector.broadcast %cst_26 : f32 to vector<2x128xf32>
      %c0_27 = arith.constant 0 : index
      %c0_28 = arith.constant 0 : index
      %35 = vector.load %arg8[%c0_27, %c0_28] : memref<2x128xf32, #tpu.memory_space<vmem>>, vector<2x128xf32>
      tpu.vector_store %arg8[%c0_27, %c0_28], %34 {strides = array<i32>} : memref<2x128xf32, #tpu.memory_space<vmem>>, vector<2x128xf32>,
      %cst_29 = arith.constant 0.000000e+00 : f32
      %36 = vector.broadcast %cst_29 : f32 to vector<2x1xf32>
      %c0_30 = arith.constant 0 : index
      %c0_31 = arith.constant 0 : index
      %37 = vector.load %arg9[%c0_30, %c0_31] : memref<2x1xf32, #tpu.memory_space<vmem>>, vector<2x1xf32>
      tpu.vector_store %arg9[%c0_30, %c0_31], %36 {strides = array<i32>} : memref<2x1xf32, #tpu.memory_space<vmem>>, vector<2x1xf32>,
    } else {
    }
    %c0 = arith.constant 0 : index
    %c0_1 = arith.constant 0 : index
    %c0_2 = arith.constant 0 : index
    %3 = vector.load %arg1[%c0, %c0_1, %c0_2] : memref<2x8x128xf32, #tpu.memory_space<vmem>>, vector<2x8x128xf32>
    %4 = vector.shape_cast %3 : vector<2x8x128xf32> to vector<16x128xf32>
    %c0_3 = arith.constant 0 : index
    %c0_4 = arith.constant 0 : index
    %5 = vector.load %arg3[%c0_3, %c0_4] : memref<128x128xf32, #tpu.memory_space<vmem>>, vector<128x128xf32>
    %c0_5 = arith.constant 0 : index
    %c0_6 = arith.constant 0 : index
    %6 = vector.load %arg4[%c0_5, %c0_6] : memref<1x128xf32, #tpu.memory_space<vmem>>, vector<1x128xf32>
    %cst = arith.constant dense<0.000000e+00> : vector<16x128xf32>
    %7 = tpu.matmul %4, %5, %cst {dimension_numbers = #tpu.dot_dimension_numbers<[1], [0], [0], [1], [0, 0, 1, 1], [], []>} : vector<16x128xf32>, vector<128x128xf32>, vector<16x128xf32> -> vector<16x128xf32>
    %8 = vector.broadcast %6 : vector<1x128xf32> to vector<16x128xf32>
    %9 = arith.addf %7, %8 : vector<16x128xf32>
    %10 = math.tanh %9 : vector<16x128xf32>
    %c0_7 = arith.constant 0 : index
    %c0_8 = arith.constant 0 : index
    %11 = vector.load %arg5[%c0_7, %c0_8] : memref<128x128xf32, #tpu.memory_space<vmem>>, vector<128x128xf32>
    %c0_9 = arith.constant 0 : index
    %c0_10 = arith.constant 0 : index
    %12 = vector.load %arg6[%c0_9, %c0_10] : memref<1x128xf32, #tpu.memory_space<vmem>>, vector<1x128xf32>
    %cst_11 = arith.constant dense<0.000000e+00> : vector<16x128xf32>
    %13 = tpu.matmul %10, %11, %cst_11 {dimension_numbers = #tpu.dot_dimension_numbers<[1], [0], [0], [1], [0, 0, 1, 1], [], []>} : vector<16x128xf32>, vector<128x128xf32>, vector<16x128xf32> -> vector<16x128xf32>
    %14 = vector.broadcast %12 : vector<1x128xf32> to vector<16x128xf32>
    %15 = arith.addf %13, %14 : vector<16x128xf32>
    %16 = math.tanh %15 : vector<16x128xf32>
    %17 = vector.shape_cast %16 : vector<16x128xf32> to vector<2x8x128xf32>
    %c0_12 = arith.constant 0 : index
    %c0_13 = arith.constant 0 : index
    %18 = vector.load %arg2[%c0_12, %c0_13] : memref<2x8xf32, #tpu.memory_space<vmem>>, vector<2x8xf32>
    %c0_14 = arith.constant 0 : index
    %c0_15 = arith.constant 0 : index
    %19 = vector.load %arg8[%c0_14, %c0_15] : memref<2x128xf32, #tpu.memory_space<vmem>>, vector<2x128xf32>
    %20 = vector.shape_cast %18 : vector<2x8xf32> to vector<2x8x1xf32>
    %21 = vector.broadcast %20 : vector<2x8x1xf32> to vector<2x8x128xf32>
    %22 = arith.mulf %17, %21 : vector<2x8x128xf32>
    %cst_16 = arith.constant dense<0.000000e+00> : vector<2x128xf32>
    %23 = vector.multi_reduction <add>, %22, %cst_16 [1] : vector<2x8x128xf32> to vector<2x128xf32>
    %24 = arith.addf %19, %23 : vector<2x128xf32>
    %c0_17 = arith.constant 0 : index
    %c0_18 = arith.constant 0 : index
    %25 = vector.load %arg8[%c0_17, %c0_18] : memref<2x128xf32, #tpu.memory_space<vmem>>, vector<2x128xf32>
    tpu.vector_store %arg8[%c0_17, %c0_18], %24 {strides = array<i32>} : memref<2x128xf32, #tpu.memory_space<vmem>>, vector<2x128xf32>,
    %c0_19 = arith.constant 0 : index
    %c0_20 = arith.constant 0 : index
    %26 = vector.load %arg9[%c0_19, %c0_20] : memref<2x1xf32, #tpu.memory_space<vmem>>, vector<2x1xf32>
    %cst_21 = arith.constant dense<0.000000e+00> : vector<2xf32>
    %27 = vector.multi_reduction <add>, %18, %cst_21 [1] : vector<2x8xf32> to vector<2xf32>
    %28 = vector.shape_cast %27 : vector<2xf32> to vector<2x1xf32>
    %29 = arith.addf %26, %28 : vector<2x1xf32>
    %c0_22 = arith.constant 0 : index
    %c0_23 = arith.constant 0 : index
    %30 = vector.load %arg9[%c0_22, %c0_23] : memref<2x1xf32, #tpu.memory_space<vmem>>, vector<2x1xf32>
    tpu.vector_store %arg9[%c0_22, %c0_23], %29 {strides = array<i32>} : memref<2x1xf32, #tpu.memory_space<vmem>>, vector<2x1xf32>,
    %c0_i32_24 = arith.constant 0 : i32
    %31 = arith.cmpi eq, %arg0, %c0_i32_24 : i32
    %32 = arith.extui %31 : i1 to i32
    %c0_i32_25 = arith.constant 0 : i32
    %33 = arith.cmpi ne, %32, %c0_i32_25 : i32
    scf.if %33 {
      %c0_26 = arith.constant 0 : index
      %c0_27 = arith.constant 0 : index
      %34 = vector.load %arg9[%c0_26, %c0_27] : memref<2x1xf32, #tpu.memory_space<vmem>>, vector<2x1xf32>
      %cst_28 = arith.constant 1.000000e+00 : f32
      %35 = vector.broadcast %cst_28 : f32 to vector<2x1xf32>
      %36 = arith.maximumf %34, %35 : vector<2x1xf32>
      %37 = tpu.reciprocal %36 {approx = true} : vector<2x1xf32> -> vector<2x1xf32>
      %c0_29 = arith.constant 0 : index
      %c0_30 = arith.constant 0 : index
      %38 = vector.load %arg8[%c0_29, %c0_30] : memref<2x128xf32, #tpu.memory_space<vmem>>, vector<2x128xf32>
      %39 = vector.broadcast %37 : vector<2x1xf32> to vector<2x128xf32>
      %40 = arith.mulf %38, %39 : vector<2x128xf32>
      %c0_31 = arith.constant 0 : index
      %c0_32 = arith.constant 0 : index
      %41 = vector.load %arg7[%c0_31, %c0_32] : memref<2x128xf32, #tpu.memory_space<vmem>>, vector<2x128xf32>
      tpu.vector_store %arg7[%c0_31, %c0_32], %40 {strides = array<i32>} : memref<2x128xf32, #tpu.memory_space<vmem>>, vector<2x128xf32>,
    } else {
    }
    return
  }
  func.func @transform_0(%arg0: i32) -> (i32, i32, i32) {
    %c0_i32 = arith.constant 0 : i32
    %c0_i32_0 = arith.constant 0 : i32
    %c0_i32_1 = arith.constant 0 : i32
    return %c0_i32, %arg0, %c0_i32_0 : i32, i32, i32
  }
  func.func @transform_1(%arg0: i32) -> (i32, i32) {
    %c0_i32 = arith.constant 0 : i32
    %c0_i32_0 = arith.constant 0 : i32
    return %c0_i32, %arg0 : i32, i32
  }
  func.func @transform_2(%arg0: i32) -> (i32, i32) {
    %c0_i32 = arith.constant 0 : i32
    %c0_i32_0 = arith.constant 0 : i32
    %c0_i32_1 = arith.constant 0 : i32
    return %c0_i32, %c0_i32_0 : i32, i32
  }
  func.func @transform_3(%arg0: i32) -> (i32, i32) {
    %c0_i32 = arith.constant 0 : i32
    %c0_i32_0 = arith.constant 0 : i32
    %c0_i32_1 = arith.constant 0 : i32
    return %c0_i32, %c0_i32_0 : i32, i32
  }
  func.func @transform_4(%arg0: i32) -> (i32, i32) {
    %c0_i32 = arith.constant 0 : i32
    %c0_i32_0 = arith.constant 0 : i32
    %c0_i32_1 = arith.constant 0 : i32
    return %c0_i32, %c0_i32_0 : i32, i32
  }
  func.func @transform_5(%arg0: i32) -> (i32, i32) {
    %c0_i32 = arith.constant 0 : i32
    %c0_i32_0 = arith.constant 0 : i32
    %c0_i32_1 = arith.constant 0 : i32
    return %c0_i32, %c0_i32_0 : i32, i32
  }
  func.func @transform_6(%arg0: i32) -> (i32, i32) {
    %c0_i32 = arith.constant 0 : i32
    %c0_i32_0 = arith.constant 0 : i32
    %c0_i32_1 = arith.constant 0 : i32
    return %c0_i32, %c0_i32_0 : i32, i32
  }
}

</mosaic_0001>

<llo_original>
// kernel: tpu_custom_call.1
$region0: #{tpu_custom_call.1}
  #allocation0 [shape = 'u32[]', space=smem, size = 0x4, offset = 0x4, fixed_abs, tag = 'smem constant byte address 0x4 - core index']
  #allocation1 [shape = 'u32[144,128]{1,0:T(1,128)}', space=vmem, size = 0x12000, scoped, tag = 'internal scratch']
  #allocation2 [shape = 'f32[2,128]{1,0:T(2,128)}', space=vmem, size = 0x400, scoped, tag = 'scratch operand']
  #allocation3 [shape = 'f32[2,1]{1,0:T(2,128)}', space=vmem, size = 0x400, scoped, tag = 'scratch operand']
  %s0 = inlined_call_operand.hbm [shape: f32[2,8,128], index: 0, kind: input, shape index: {}]
  %s1 = inlined_call_operand.vmem [shape: f32[2,8], index: 1, kind: input, shape index: {}]
  %s2 = inlined_call_operand.hbm [shape: f32[128,128], index: 2, kind: input, shape index: {}]
  %s3 = inlined_call_operand.vmem [shape: f32[1,128], index: 3, kind: input, shape index: {}]
  %s4 = inlined_call_operand.hbm [shape: f32[128,128], index: 4, kind: input, shape index: {}]
  %s5 = inlined_call_operand.vmem [shape: f32[1,128], index: 5, kind: input, shape index: {}]
  %s6 = inlined_call_operand.hbm [shape: f32[2,128], index: 6, kind: output, shape index: {}]
  %s7 = sld [smem:[#allocation0]]
  $region54: #{tpu_custom_call.1} parent=0
    _
  %s9 = ssub.s32 1, %s7
  %s10 = scalar_select 0, %s9, %s7
  $region1: #{tpu_custom_call.1} parent=0
    #allocation4 [shape = 'u8[8192]{0}', space=vmem, size = 0x2000, scoped, tag = 'input window, operand 0, single buffered']
    #allocation5 [shape = 's32[1]{0}', space=sflag, size = 0x4, scoped, tag = 'scoped memory for tpu_custom_call.1']
    #allocation6 [shape = 's32[1]{0}', space=sflag, size = 0x4, scoped, tag = 'scoped memory for tpu_custom_call.1']
    #allocation7 [shape = 'u8[65536]{0}', space=vmem, size = 0x10000, scoped, tag = 'input window, operand 2, single buffered']
    #allocation8 [shape = 's32[1]{0}', space=sflag, size = 0x4, scoped, tag = 'scoped memory for tpu_custom_call.1']
    #allocation9 [shape = 'u8[65536]{0}', space=vmem, size = 0x10000, scoped, tag = 'input window, operand 4, single buffered']
    #allocation10 [shape = 'u8[1024]{0}', space=vmem, size = 0x400, scoped, tag = 'output window, operand 0, single buffered']
    %11 = vsyncpa [#allocation5], 0
    %12 = vsyncpa [#allocation8], 0
    %13 = vsyncpa [#allocation6], 0
    // Predicated region
    $region2: #{tpu_custom_call.1} parent=1 // pred_check
      _
    $region3: #{tpu_custom_call.1} parent=1 // pred_check_branch
      %15 = sbr.rel (0) target = $region5
    $region4: #{tpu_custom_call.1} parent=1 // pred_region
      %s17 = ssub.s32 256, 256
      %18 = vsyncadd [#allocation5], %s17
      %s19 = sshll.u32 [#allocation4], 4
      %s20 = int_to_ptr.vmem [resolvable:$true] %s19
      %25 = dma.hbm_to_vmem [thread:$0]  %s0, 256, %s20, [#allocation5], 128, 128, 8
    $region5: #{tpu_custom_call.1} parent=1 // pred_fallthru
      _
    // Predicated region
    $region6: #{tpu_custom_call.1} parent=1 // pred_check
      _
    $region7: #{tpu_custom_call.1} parent=1 // pred_check_branch
      %27 = sbr.rel (0) target = $region9
    $region8: #{tpu_custom_call.1} parent=1 // pred_region
      _
    $region9: #{tpu_custom_call.1} parent=1 // pred_fallthru
      _
    // Predicated region
    $region10: #{tpu_custom_call.1} parent=1 // pred_check
      _
    $region11: #{tpu_custom_call.1} parent=1 // pred_check_branch
      %29 = sbr.rel (0) target = $region13
    $region12: #{tpu_custom_call.1} parent=1 // pred_region
      %s31 = ssub.s32 2048, 2048
      %32 = vsyncadd [#allocation8], %s31
      %s33 = sshll.u32 [#allocation7], 4
      %s34 = int_to_ptr.vmem [resolvable:$true] %s33
      %39 = dma.hbm_to_vmem [thread:$0]  %s2, 2048, %s34, [#allocation8], 128, 128, 8
    $region13: #{tpu_custom_call.1} parent=1 // pred_fallthru
      _
    // Predicated region
    $region14: #{tpu_custom_call.1} parent=1 // pred_check
      _
    $region15: #{tpu_custom_call.1} parent=1 // pred_check_branch
      %41 = sbr.rel (0) target = $region17
    $region16: #{tpu_custom_call.1} parent=1 // pred_region
      _
    $region17: #{tpu_custom_call.1} parent=1 // pred_fallthru
      _
    // Predicated region
    $region18: #{tpu_custom_call.1} parent=1 // pred_check
      _
    $region19: #{tpu_custom_call.1} parent=1 // pred_check_branch
      %43 = sbr.rel (0) target = $region21
    $region20: #{tpu_custom_call.1} parent=1 // pred_region
      %s45 = ssub.s32 2048, 2048
      %46 = vsyncadd [#allocation8], %s45
      %s47 = sshll.u32 [#allocation9], 4
      %s48 = int_to_ptr.vmem [resolvable:$true] %s47
      %53 = dma.hbm_to_vmem [thread:$0]  %s4, 2048, %s48, [#allocation8], 128, 128, 8
    $region21: #{tpu_custom_call.1} parent=1 // pred_fallthru
      _
    // Predicated region
    $region22: #{tpu_custom_call.1} parent=1 // pred_check
      _
    $region23: #{tpu_custom_call.1} parent=1 // pred_check_branch
      %55 = sbr.rel (0) target = $region25
    $region24: #{tpu_custom_call.1} parent=1 // pred_region
      _
    $region25: #{tpu_custom_call.1} parent=1 // pred_fallthru
      _
    // Predicated region
    $region26: #{tpu_custom_call.1} parent=1 // pred_check
      _
    $region27: #{tpu_custom_call.1} parent=1 // pred_check_branch
      %57 = sbr.rel (0) target = $region29
    $region28: #{tpu_custom_call.1} parent=1 // pred_region
      %58 = dma.done [#allocation5], 256
    $region29: #{tpu_custom_call.1} parent=1 // pred_fallthru
      _
    // Predicated region
    $region30: #{tpu_custom_call.1} parent=1 // pred_check
      _
    $region31: #{tpu_custom_call.1} parent=1 // pred_check_branch
      %60 = sbr.rel (0) target = $region33
    $region32: #{tpu_custom_call.1} parent=1 // pred_region
      %61 = dma.done [#allocation8], 2048
    $region33: #{tpu_custom_call.1} parent=1 // pred_fallthru
      _
    // Predicated region
    $region34: #{tpu_custom_call.1} parent=1 // pred_check
      _
    $region35: #{tpu_custom_call.1} parent=1 // pred_check_branch
      %63 = sbr.rel (0) target = $region37
    $region36: #{tpu_custom_call.1} parent=1 // pred_region
      %64 = dma.done [#allocation8], 2048
    $region37: #{tpu_custom_call.1} parent=1 // pred_fallthru
      _
    %p65 = scmp.eq.s32.totalorder 0, 0
    // Predicated region
    $region38: #{tpu_custom_call.1} parent=1 // pred_check
      %p66 = pneg %p65
    $region39: #{tpu_custom_call.1} parent=1 // pred_check_branch
      %68 = sbr.rel (%p66) target = $region41
    $region40: #{tpu_custom_call.1} parent=1 // pred_region
      %69 = vst [vmem:[#allocation2] sm:$0x3] 0.0
      %vm70 = vcmask 1024
      %71 = vst.msk [vmem:[#allocation3] sm:$0x3] %vm70, 0.0
    $region41: #{tpu_custom_call.1} parent=1 // pred_fallthru
      _
    %v72 = vld [vmem:[#allocation4] sm:$0xff]
    %v73 = vld [vmem:[#allocation4 + $0x8] sm:$0xff]
    %v74 = vld [vmem:[#allocation7] sm:$0xff]
    %v75 = vld [vmem:[#allocation7 + $0x8] sm:$0xff]
    %v76 = vld [vmem:[#allocation7 + $0x10] sm:$0xff]
    %v77 = vld [vmem:[#allocation7 + $0x18] sm:$0xff]
    %v78 = vld [vmem:[#allocation7 + $0x20] sm:$0xff]
    %v79 = vld [vmem:[#allocation7 + $0x28] sm:$0xff]
    %v80 = vld [vmem:[#allocation7 + $0x30] sm:$0xff]
    %v81 = vld [vmem:[#allocation7 + $0x38] sm:$0xff]
    %v82 = vld [vmem:[#allocation7 + $0x40] sm:$0xff]
    %v83 = vld [vmem:[#allocation7 + $0x48] sm:$0xff]
    %v84 = vld [vmem:[#allocation7 + $0x50] sm:$0xff]
    %v85 = vld [vmem:[#allocation7 + $0x58] sm:$0xff]
    %v86 = vld [vmem:[#allocation7 + $0x60] sm:$0xff]
    %v87 = vld [vmem:[#allocation7 + $0x68] sm:$0xff]
    %v88 = vld [vmem:[#allocation7 + $0x70] sm:$0xff]
    %v89 = vld [vmem:[#allocation7 + $0x78] sm:$0xff]
    %v90 = vld [vmem:[%s3] sm:$0x1]
    %v92 = vlaneseq
    %v93 = vshrl.u32 %v92, 7
    %v94 = vsub.s32 0, %v93
    %v95 = vrot.slane %v90, %v94
    %97 = vmatprep.subr.mxu0 0.0
    %98 = vmatpush1.msra.mxu0 %v74
    %99 = vmatprep.subr.mxu0 0.0
    %100 = vmatpush1.msra.mxu0 %v75
    %101 = vmatprep.subr.mxu0 0.0
    %102 = vmatpush1.msra.mxu0 %v76
    %103 = vmatprep.subr.mxu0 0.0
    %104 = vmatpush1.msra.mxu0 %v77
    %105 = vmatprep.subr.mxu0 0.0
    %106 = vmatpush1.msra.mxu0 %v78
    %107 = vmatprep.subr.mxu0 0.0
    %108 = vmatpush1.msra.mxu0 %v79
    %109 = vmatprep.subr.mxu0 0.0
    %110 = vmatpush1.msra.mxu0 %v80
    %111 = vmatprep.subr.mxu0 0.0
    %112 = vmatpush1.msra.mxu0 %v81
    %113 = vmatprep.subr.mxu0 0.0
    %114 = vmatpush1.msra.mxu0 %v82
    %115 = vmatprep.subr.mxu0 0.0
    %116 = vmatpush1.msra.mxu0 %v83
    %117 = vmatprep.subr.mxu0 0.0
    %118 = vmatpush1.msra.mxu0 %v84
    %119 = vmatprep.subr.mxu0 0.0
    %120 = vmatpush1.msra.mxu0 %v85
    %121 = vmatprep.subr.mxu0 0.0
    %122 = vmatpush1.msra.mxu0 %v86
    %123 = vmatprep.subr.mxu0 0.0
    %124 = vmatpush1.msra.mxu0 %v87
    %125 = vmatprep.subr.mxu0 0.0
    %126 = vmatpush1.msra.mxu0 %v88
    %127 = vmatprep.subr.mxu0 0.0
    %128 = vmatpush1.msra.mxu0 %v89
    %129 = vmatprep.subr.mxu0 0.0
    %130 = vmatpush1.msra.mxu0 0.0
    %131 = vmatprep.subr.mxu0 0.0
    %132 = vmatpush1.msra.mxu0 0.0
    %133 = vmatprep.subr.mxu0 0.0
    %134 = vmatpush1.msra.mxu0 0.0
    %135 = vmatprep.subr.mxu0 0.0
    %136 = vmatpush1.msra.mxu0 0.0
    %137 = vmatprep.subr.mxu0 0.0
    %138 = vmatpush1.msra.mxu0 0.0
    %139 = vmatprep.subr.mxu0 0.0
    %140 = vmatpush1.msra.mxu0 0.0
    %141 = vmatprep.subr.mxu0 0.0
    %142 = vmatpush1.msra.mxu0 0.0
    %143 = vmatprep.subr.mxu0 0.0
    %144 = vmatpush1.msra.mxu0 0.0
    %145 = vmatprep.subr.mxu0 0.0
    %146 = vmatpush1.msra.mxu0 0.0
    %147 = vmatprep.subr.mxu0 0.0
    %148 = vmatpush1.msra.mxu0 0.0
    %149 = vmatprep.subr.mxu0 0.0
    %150 = vmatpush1.msra.mxu0 0.0
    %151 = vmatprep.subr.mxu0 0.0
    %152 = vmatpush1.msra.mxu0 0.0
    %153 = vmatprep.subr.mxu0 0.0
    %154 = vmatpush1.msra.mxu0 0.0
    %155 = vmatprep.subr.mxu0 0.0
    %156 = vmatpush1.msra.mxu0 0.0
    %157 = vmatprep.subr.mxu0 0.0
    %158 = vmatpush1.msra.mxu0 0.0
    %159 = vmatprep.subr.mxu0 0.0
    %160 = vmatpush1.msra.mxu0 0.0
    %161 = vmatprep.mubr.f32.mxu0 0.0
    %162 = vmatmul.mubr.f32.gmra.mrb[0].mxu0 %v72
    %v163 = vpop.f32.mrb[0].mxu0
    %v164 = vadd.f32 %v95, %v163
    %v165 = vpop.f32.mrb[0].mxu0
    %166 = vmatprep.mubr.f32.mxu0 0.0
    %167 = vmatmul.mubr.f32.gmra.mrb[0].mxu0 %v73
    %v168 = vpop.f32.mrb[0].mxu0
    %v169 = vadd.f32 %v95, %v168
    %v170 = vpop.f32.mrb[0].mxu0
    %171 = vdwg.mxu0
    %v172 = vtanh.pop %v164
    %v173 = vtanh.pop %v169
    %v174 = vld [vmem:[#allocation9] sm:$0xff]
    %v175 = vld [vmem:[#allocation9 + $0x8] sm:$0xff]
    %v176 = vld [vmem:[#allocation9 + $0x10] sm:$0xff]
    %v177 = vld [vmem:[#allocation9 + $0x18] sm:$0xff]
    %v178 = vld [vmem:[#allocation9 + $0x20] sm:$0xff]
    %v179 = vld [vmem:[#allocation9 + $0x28] sm:$0xff]
    %v180 = vld [vmem:[#allocation9 + $0x30] sm:$0xff]
    %v181 = vld [vmem:[#allocation9 + $0x38] sm:$0xff]
    %v182 = vld [vmem:[#allocation9 + $0x40] sm:$0xff]
    %v183 = vld [vmem:[#allocation9 + $0x48] sm:$0xff]
    %v184 = vld [vmem:[#allocation9 + $0x50] sm:$0xff]
    %v185 = vld [vmem:[#allocation9 + $0x58] sm:$0xff]
    %v186 = vld [vmem:[#allocation9 + $0x60] sm:$0xff]
    %v187 = vld [vmem:[#allocation9 + $0x68] sm:$0xff]
    %v188 = vld [vmem:[#allocation9 + $0x70] sm:$0xff]
    %v189 = vld [vmem:[#allocation9 + $0x78] sm:$0xff]
    %v190 = vld [vmem:[%s5] sm:$0x1]
    %v192 = vlaneseq
    %v193 = vshrl.u32 %v192, 7
    %v194 = vsub.s32 0, %v193
    %v195 = vrot.slane %v190, %v194
    %197 = vmatprep.subr.mxu0 0.0
    %198 = vmatpush1.msra.mxu0 %v174
    %199 = vmatprep.subr.mxu0 0.0
    %200 = vmatpush1.msra.mxu0 %v175
    %201 = vmatprep.subr.mxu0 0.0
    %202 = vmatpush1.msra.mxu0 %v176
    %203 = vmatprep.subr.mxu0 0.0
    %204 = vmatpush1.msra.mxu0 %v177
    %205 = vmatprep.subr.mxu0 0.0
    %206 = vmatpush1.msra.mxu0 %v178
    %207 = vmatprep.subr.mxu0 0.0
    %208 = vmatpush1.msra.mxu0 %v179
    %209 = vmatprep.subr.mxu0 0.0
    %210 = vmatpush1.msra.mxu0 %v180
    %211 = vmatprep.subr.mxu0 0.0
    %212 = vmatpush1.msra.mxu0 %v181
    %213 = vmatprep.subr.mxu0 0.0
    %214 = vmatpush1.msra.mxu0 %v182
    %215 = vmatprep.subr.mxu0 0.0
    %216 = vmatpush1.msra.mxu0 %v183
    %217 = vmatprep.subr.mxu0 0.0
    %218 = vmatpush1.msra.mxu0 %v184
    %219 = vmatprep.subr.mxu0 0.0
    %220 = vmatpush1.msra.mxu0 %v185
    %221 = vmatprep.subr.mxu0 0.0
    %222 = vmatpush1.msra.mxu0 %v186
    %223 = vmatprep.subr.mxu0 0.0
    %224 = vmatpush1.msra.mxu0 %v187
    %225 = vmatprep.subr.mxu0 0.0
    %226 = vmatpush1.msra.mxu0 %v188
    %227 = vmatprep.subr.mxu0 0.0
    %228 = vmatpush1.msra.mxu0 %v189
    %229 = vmatprep.subr.mxu0 0.0
    %230 = vmatpush1.msra.mxu0 0.0
    %231 = vmatprep.subr.mxu0 0.0
    %232 = vmatpush1.msra.mxu0 0.0
    %233 = vmatprep.subr.mxu0 0.0
    %234 = vmatpush1.msra.mxu0 0.0
    %235 = vmatprep.subr.mxu0 0.0
    %236 = vmatpush1.msra.mxu0 0.0
    %237 = vmatprep.subr.mxu0 0.0
    %238 = vmatpush1.msra.mxu0 0.0
    %239 = vmatprep.subr.mxu0 0.0
    %240 = vmatpush1.msra.mxu0 0.0
    %241 = vmatprep.subr.mxu0 0.0
    %242 = vmatpush1.msra.mxu0 0.0
    %243 = vmatprep.subr.mxu0 0.0
    %244 = vmatpush1.msra.mxu0 0.0
    %245 = vmatprep.subr.mxu0 0.0
    %246 = vmatpush1.msra.mxu0 0.0
    %247 = vmatprep.subr.mxu0 0.0
    %248 = vmatpush1.msra.mxu0 0.0
    %249 = vmatprep.subr.mxu0 0.0
    %250 = vmatpush1.msra.mxu0 0.0
    %251 = vmatprep.subr.mxu0 0.0
    %252 = vmatpush1.msra.mxu0 0.0
    %253 = vmatprep.subr.mxu0 0.0
    %254 = vmatpush1.msra.mxu0 0.0
    %255 = vmatprep.subr.mxu0 0.0
    %256 = vmatpush1.msra.mxu0 0.0
    %257 = vmatprep.subr.mxu0 0.0
    %258 = vmatpush1.msra.mxu0 0.0
    %259 = vmatprep.subr.mxu0 0.0
    %260 = vmatpush1.msra.mxu0 0.0
    %261 = vmatprep.mubr.f32.mxu0 0.0
    %262 = vmatmul.mubr.f32.gmra.mrb[0].mxu0 %v172
    %v263 = vpop.f32.mrb[0].mxu0
    %v264 = vadd.f32 %v195, %v263
    %v265 = vpop.f32.mrb[0].mxu0
    %266 = vmatprep.mubr.f32.mxu0 0.0
    %267 = vmatmul.mubr.f32.gmra.mrb[0].mxu0 %v173
    %v268 = vpop.f32.mrb[0].mxu0
    %v269 = vadd.f32 %v195, %v268
    %v270 = vpop.f32.mrb[0].mxu0
    %271 = vdwg.mxu0
    %v272 = vtanh.pop %v264
    %v273 = vtanh.pop %v269
    %v274 = vld [vmem:[%s1] sm:$0x3]
    %v275 = vld [vmem:[#allocation2] sm:$0x3]
    %v276 = vlaneseq
    %v277 = vshrl.u32 %v276, 7
    %v278 = vsub.s32 0, %v277
    %v279 = vrot.slane %v274, %v278
    %281 = vbcast.lane.b32.xlu0 %v279, 256
    %v282 = vpop.permute.xlu0 %281
    %v283 = vlaneseq
    %v284 = vshrl.u32 %v283, 7
    %v285 = vsub.s32 1, %v284
    %v286 = vrot.slane %v274, %v285
    %288 = vbcast.lane.b32.xlu0 %v286, 256
    %v289 = vpop.permute.xlu0 %288
    %v290 = vmul.f32 %v272, %v282
    %v291 = vmul.f32 %v273, %v289
    %v292 = vrot.slane %v290, 4
    %v293 = vadd.f32 %v290, %v292
    %v294 = vrot.slane %v293, 2
    %v295 = vadd.f32 %v293, %v294
    %v296 = vrot.slane %v295, 1
    %v297 = vadd.f32 %v295, %v296
    %v298 = vrot.slane %v291, 4
    %v299 = vadd.f32 %v291, %v298
    %v300 = vrot.slane %v299, 2
    %v301 = vadd.f32 %v299, %v300
    %v302 = vrot.slane %v301, 1
    %v303 = vadd.f32 %v301, %v302
    %vm306 = vcmask 1041409
    %v307 = vsel %vm306, %v303, %v297
    %v309 = vadd.f32 %v275, %v307
    %310 = vst [vmem:[#allocation2] sm:$0x3] %v309
    %v311 = vld [vmem:[#allocation3] sm:$0x3]
    %vm312 = vcmask 58368
    %v313 = vsel %vm312, %v274, 0.0
    %314 = vadd.xlane.f32.xlu0 %v313
    %v315 = vpop.xlane.xlu0 %314
    %v316 = vadd.f32 %v311, %v315
    %vm317 = vcmask 1024
    %318 = vst.msk [vmem:[#allocation3] sm:$0x3] %vm317, %v316
    // Predicated region
    $region42: #{tpu_custom_call.1} parent=1 // pred_check
      %p319 = pneg %p65
    $region43: #{tpu_custom_call.1} parent=1 // pred_check_branch
      %321 = sbr.rel (%p319) target = $region45
    $region44: #{tpu_custom_call.1} parent=1 // pred_region
      %v322 = vld [vmem:[#allocation3] sm:$0x3]
      %v323 = vmax.f32 %v322, 1.0
      %v324 = vrcp.pop %v323
      %v325 = vld [vmem:[#allocation2] sm:$0x3]
      %327 = vset.pattern.permute.xlu0 0
      %328 = vperm.xlu0 %327, %v324
      %v329 = vpop.permute.xlu0 %328
      %v331 = vmul.f32 %v325, %v329
      %332 = vst [vmem:[#allocation10] sm:$0x3] %v331
    $region45: #{tpu_custom_call.1} parent=1 // pred_fallthru
      _
    // Predicated region
    $region46: #{tpu_custom_call.1} parent=1 // pred_check
      _
    $region47: #{tpu_custom_call.1} parent=1 // pred_check_branch
      %334 = sbr.rel (0) target = $region49
    $region48: #{tpu_custom_call.1} parent=1 // pred_region
      %s336 = ssub.s32 32, 32
      %337 = vsyncadd [#allocation6], %s336
      %s339 = sshll.u32 [#allocation10], 4
      %s340 = int_to_ptr.vmem [resolvable:$true] %s339
      %342 = dma.vmem_to_hbm [thread:$0]  %s340, 32, %s6, [#allocation6]
    $region49: #{tpu_custom_call.1} parent=1 // pred_fallthru
      _
    // Predicated region
    $region50: #{tpu_custom_call.1} parent=1 // pred_check
      _
    $region51: #{tpu_custom_call.1} parent=1 // pred_check_branch
      %344 = sbr.rel (0) target = $region53
    $region52: #{tpu_custom_call.1} parent=1 // pred_region
      %345 = dma.done [#allocation6], 32
    $region53: #{tpu_custom_call.1} parent=1 // pred_fallthru
      _
    %346 = vsyncpa [#allocation5], 1
    %347 = vsyncpa [#allocation8], 1
    %348 = vsyncpa [#allocation6], 1

</llo_original>
